<compile_context>
chip_gen: v5e
topology: v5e:2x2
jax: 0.10.0
libtpu: 0.0.40
codegen_flags: <defaults>
</compile_context>

<pallas_src>
import functools

import jax
import jax.numpy as jnp
from jax import lax
from jax.experimental import pallas as pl
from jax.experimental.pallas import tpu as pltpu


def _softplus(x):
    # Numerically stable softplus, matches torch.nn.Softplus (beta=1).
    zero = jnp.zeros((), dtype=x.dtype)
    return jnp.maximum(x, zero) + jnp.log1p(jnp.exp(-jnp.abs(x)))


def _ffnet_kernel(x_ref,
                  w1_ref, b1_ref,
                  w2_ref, b2_ref,
                  w3_ref, b3_ref,
                  w4_ref, b4_ref,
                  o_ref, *, act_dtype):
    # x tile: (n_in, block_b) -- the 128-wide lane axis carries the batch tile.
    h = x_ref[...]

    def layer(w_ref, b_ref, h):
        z = jnp.dot(w_ref[...], h, preferred_element_type=jnp.float32)
        z = z + b_ref[...]                       # f32 bias add on the f32 accumulator
        return _softplus(z.astype(act_dtype))    # softplus on the EUP in act dtype

    h = layer(w1_ref, b1_ref, h)                 # (n_hidden, block_b)
    h = layer(w2_ref, b2_ref, h)
    h = layer(w3_ref, b3_ref, h)

    out = jnp.dot(w4_ref[...], h, preferred_element_type=jnp.float32) + b4_ref[...]
    o_ref[...] = out.astype(o_ref.dtype)         # (n_out, block_b): lane-dense store


def _default_act_dtype():
    """bf16 activations only where the VPU/EUP are bf16-native (v6e / v7x)."""
    try:
        kind = jax.devices()[0].device_kind.lower()
    except Exception:
        return jnp.float32
    if any(tag in kind for tag in ("v6", "v7", "6e", "7x")):
        return jnp.bfloat16
    return jnp.float32   # v5e/v5p/v4: bf16 VPU/EUP absent -> converts only cost


@functools.partial(jax.jit, static_argnames=("block_b", "act_dtype"))
def ffnet_forward(x, params, block_b=2048, act_dtype=jnp.float32):
    """x: (B, n_input) float32. params: torch-layout w_i (out, in), b_i (out, 1)."""
    B, n_in = x.shape
    n_hidden = params["w1"].shape[0]
    n_out = params["w4"].shape[0]

    # --- batch tile selection -------------------------------------------------
    # Lane-dense tile (multiple of 128), clamped to the rounded-up batch so tiny
    # batches don't compute thousands of padded rows; if the batch is big enough
    # keep >= 2 tiles so v7x's two TensorCores both get work.
    b_aligned = 128 * ((B + 127) // 128)
    blk = min(block_b, b_aligned)
    if b_aligned >= 2 * 128:
        blk = min(blk, max(128, (b_aligned // 2) // 128 * 128))
    blk = max(128, (blk // 128) * 128)

    pad = (-B) % blk
    Bp = B + pad
    grid = (Bp // blk,)

    # --- lane-dense x: fold the pad into the transpose ------------------------
    x_t = x.T.astype(act_dtype)                  # (n_in, B)
    if pad:
        x_t = jnp.pad(x_t, ((0, 0), (0, pad)))   # (n_in, Bp)

    # bf16 weights feed the MXU directly (f32 accumulation); biases stay f32.
    w1 = params["w1"].astype(act_dtype); b1 = params["b1"]
    w2 = params["w2"].astype(act_dtype); b2 = params["b2"]
    w3 = params["w3"].astype(act_dtype); b3 = params["b3"]
    w4 = params["w4"].astype(act_dtype); b4 = params["b4"]

    def resident(shape):
        # Grid-invariant block: stays resident in VMEM across all batch tiles.
        return pl.BlockSpec(shape, lambda i: (0, 0))

    in_specs = [
        pl.BlockSpec((n_in, blk), lambda i: (0, i)),                # x tile (lane-dense)
        resident((n_hidden, n_in)),     resident((n_hidden, 1)),    # layer 1
        resident((n_hidden, n_hidden)), resident((n_hidden, 1)),    # layer 2
        resident((n_hidden, n_hidden)), resident((n_hidden, 1)),    # layer 3
        resident((n_out, n_hidden)),    resident((n_out, 1)),       # layer 4
    ]
    # Output kept transposed (n_out, Bp): batch stays on the lane axis.
    out_spec = pl.BlockSpec((n_out, blk), lambda i: (0, i))

    elem = jnp.dtype(act_dtype).itemsize
    flops = 2 * Bp * (n_in * n_hidden + 2 * n_hidden * n_hidden + n_hidden * n_out)
    transcendentals = 2 * 3 * Bp * n_hidden      # exp + log1p per softplus
    weight_bytes = (elem * (n_in * n_hidden + 2 * n_hidden * n_hidden
                            + n_hidden * n_out) + 4 * (3 * n_hidden + n_out))
    bytes_accessed = elem * Bp * n_in + 4 * Bp * n_out + weight_bytes

    out_t = pl.pallas_call(
        functools.partial(_ffnet_kernel, act_dtype=act_dtype),
        out_shape=jax.ShapeDtypeStruct((n_out, Bp), jnp.float32),
        grid_spec=pltpu.PrefetchScalarGridSpec(
            num_scalar_prefetch=0,
            grid=grid,
            in_specs=in_specs,
            out_specs=out_spec,
        ),
        compiler_params=pltpu.CompilerParams(
            dimension_semantics=("parallel",)),
        cost_estimate=pl.CostEstimate(
            flops=flops,
            transcendentals=transcendentals,
            bytes_accessed=bytes_accessed),
    )(x_t, w1, b1, w2, b2, w3, b3, w4, b4)

    # Drop padded columns and restore the module's (B, n_out) output contract.
    # TODO(synk): let downstream consumers take the (n_out, B) layout directly
    # to skip this extra HBM pass.
    return out_t[:, :B].T


def init_ffnet_params(key, n_input, n_hidden, n_out):
    """Deterministic init mimicking torch.nn.Linear default (U[-1/sqrt(fan_in), +])."""
    dims = [(n_input, n_hidden), (n_hidden, n_hidden),
            (n_hidden, n_hidden), (n_hidden, n_out)]
    params = {}
    for idx, (fan_in, fan_out) in enumerate(dims, start=1):
        key, kw, kb = jax.random.split(key, 3)
        bound = 1.0 / jnp.sqrt(jnp.float32(fan_in))
        params[f"w{idx}"] = jax.random.uniform(                    # torch layout (out, in)
            kw, (fan_out, fan_in), jnp.float32, -bound, bound)
        params[f"b{idx}"] = jax.random.uniform(
            kb, (fan_out, 1), jnp.float32, -bound, bound)
    return params


def _ffnet_ref(x, params):
    h = x
    for idx in range(1, 4):
        h = jnp.dot(h, params[f"w{idx}"].T,
                    precision=lax.Precision.HIGHEST) + params[f"b{idx}"].T
        h = jax.nn.softplus(h)
    return jnp.dot(h, params["w4"].T,
                   precision=lax.Precision.HIGHEST) + params["b4"].T


if __name__ == "__main__":
    n_input, n_hidden, n_out = 16, 32, 8
    batch = 8

    key = jax.random.PRNGKey(0)
    key, kx = jax.random.split(key)
    x = jax.random.normal(kx, (batch, n_input), jnp.float32)
    params = init_ffnet_params(key, n_input, n_hidden, n_out)

    act_dtype = _default_act_dtype()             # bf16 on v6e/v7x, f32 on v5e/older
    out = ffnet_forward(x, params, act_dtype=act_dtype)
    out = jax.block_until_ready(out)

    ref = _ffnet_ref(x, params)
    tol = 5e-2 if act_dtype == jnp.bfloat16 else 1e-4
    assert out.shape == (batch, n_out)
    err = float(jnp.max(jnp.abs(out - ref)))
    assert jnp.allclose(out, ref, atol=tol, rtol=tol), err

    print("KERNEL_OK")
</pallas_src>

<mosaic_0001>
module attributes {stable_mosaic.version = 11 : i64} {
  func.func @_ffnet_kernel(%arg0: i32, %arg1: memref<16x128xf32, #tpu.memory_space<vmem>>, %arg2: memref<32x16xf32, #tpu.memory_space<vmem>>, %arg3: memref<32x1xf32, #tpu.memory_space<vmem>>, %arg4: memref<32x32xf32, #tpu.memory_space<vmem>>, %arg5: memref<32x1xf32, #tpu.memory_space<vmem>>, %arg6: memref<32x32xf32, #tpu.memory_space<vmem>>, %arg7: memref<32x1xf32, #tpu.memory_space<vmem>>, %arg8: memref<8x32xf32, #tpu.memory_space<vmem>>, %arg9: memref<8x1xf32, #tpu.memory_space<vmem>>, %arg10: memref<8x128xf32, #tpu.memory_space<vmem>>) attributes {dimension_semantics = [#tpu.dimension_semantics<parallel>], iteration_bounds = array<i64: 1>, scalar_prefetch = 0 : i64, scratch_operands = 0 : i64, tpu.core_type = #tpu.core_type<tc>, window_params = [{transform_indices = @transform_0, window_bounds = array<i64: 16, 128>}, {pipeline_mode = #tpu.pipeline_mode<synchronous>, transform_indices = @transform_1, window_bounds = array<i64: 32, 16>}, {pipeline_mode = #tpu.pipeline_mode<synchronous>, transform_indices = @transform_2, window_bounds = array<i64: 32, 1>}, {pipeline_mode = #tpu.pipeline_mode<synchronous>, transform_indices = @transform_3, window_bounds = array<i64: 32, 32>}, {pipeline_mode = #tpu.pipeline_mode<synchronous>, transform_indices = @transform_4, window_bounds = array<i64: 32, 1>}, {pipeline_mode = #tpu.pipeline_mode<synchronous>, transform_indices = @transform_5, window_bounds = array<i64: 32, 32>}, {pipeline_mode = #tpu.pipeline_mode<synchronous>, transform_indices = @transform_6, window_bounds = array<i64: 32, 1>}, {pipeline_mode = #tpu.pipeline_mode<synchronous>, transform_indices = @transform_7, window_bounds = array<i64: 8, 32>}, {pipeline_mode = #tpu.pipeline_mode<synchronous>, transform_indices = @transform_8, window_bounds = array<i64: 8, 1>}, {transform_indices = @transform_9, window_bounds = array<i64: 8, 128>}]} {
    %c0 = arith.constant 0 : index
    %c0_0 = arith.constant 0 : index
    %0 = vector.load %arg1[%c0, %c0_0] : memref<16x128xf32, #tpu.memory_space<vmem>>, vector<16x128xf32>
    %c0_1 = arith.constant 0 : index
    %c0_2 = arith.constant 0 : index
    %1 = vector.load %arg2[%c0_1, %c0_2] : memref<32x16xf32, #tpu.memory_space<vmem>>, vector<32x16xf32>
    %cst = arith.constant dense<0.000000e+00> : vector<32x128xf32>
    %2 = tpu.matmul %1, %0, %cst {dimension_numbers = #tpu.dot_dimension_numbers<[1], [0], [0], [1], [0, 0, 1, 1], [], []>} : vector<32x16xf32>, vector<16x128xf32>, vector<32x128xf32> -> vector<32x128xf32>
    %c0_3 = arith.constant 0 : index
    %c0_4 = arith.constant 0 : index
    %3 = vector.load %arg3[%c0_3, %c0_4] : memref<32x1xf32, #tpu.memory_space<vmem>>, vector<32x1xf32>
    %4 = vector.broadcast %3 : vector<32x1xf32> to vector<32x128xf32>
    %5 = arith.addf %2, %4 : vector<32x128xf32>
    %cst_5 = arith.constant 0.000000e+00 : f32
    %6 = vector.broadcast %cst_5 : f32 to vector<32x128xf32>
    %7 = arith.maximumf %5, %6 : vector<32x128xf32>
    %8 = math.absf %5 : vector<32x128xf32>
    %cst_6 = arith.constant 0.000000e+00 : f32
    %9 = vector.broadcast %cst_6 : f32 to vector<32x128xf32>
    %10 = arith.subf %9, %8 : vector<32x128xf32>
    %11 = math.exp %10 : vector<32x128xf32>
    %12 = math.log1p %11 : vector<32x128xf32>
    %13 = arith.addf %7, %12 : vector<32x128xf32>
    %c0_7 = arith.constant 0 : index
    %c0_8 = arith.constant 0 : index
    %14 = vector.load %arg4[%c0_7, %c0_8] : memref<32x32xf32, #tpu.memory_space<vmem>>, vector<32x32xf32>
    %cst_9 = arith.constant dense<0.000000e+00> : vector<32x128xf32>
    %15 = tpu.matmul %14, %13, %cst_9 {dimension_numbers = #tpu.dot_dimension_numbers<[1], [0], [0], [1], [0, 0, 1, 1], [], []>} : vector<32x32xf32>, vector<32x128xf32>, vector<32x128xf32> -> vector<32x128xf32>
    %c0_10 = arith.constant 0 : index
    %c0_11 = arith.constant 0 : index
    %16 = vector.load %arg5[%c0_10, %c0_11] : memref<32x1xf32, #tpu.memory_space<vmem>>, vector<32x1xf32>
    %17 = vector.broadcast %16 : vector<32x1xf32> to vector<32x128xf32>
    %18 = arith.addf %15, %17 : vector<32x128xf32>
    %cst_12 = arith.constant 0.000000e+00 : f32
    %19 = vector.broadcast %cst_12 : f32 to vector<32x128xf32>
    %20 = arith.maximumf %18, %19 : vector<32x128xf32>
    %21 = math.absf %18 : vector<32x128xf32>
    %cst_13 = arith.constant 0.000000e+00 : f32
    %22 = vector.broadcast %cst_13 : f32 to vector<32x128xf32>
    %23 = arith.subf %22, %21 : vector<32x128xf32>
    %24 = math.exp %23 : vector<32x128xf32>
    %25 = math.log1p %24 : vector<32x128xf32>
    %26 = arith.addf %20, %25 : vector<32x128xf32>
    %c0_14 = arith.constant 0 : index
    %c0_15 = arith.constant 0 : index
    %27 = vector.load %arg6[%c0_14, %c0_15] : memref<32x32xf32, #tpu.memory_space<vmem>>, vector<32x32xf32>
    %cst_16 = arith.constant dense<0.000000e+00> : vector<32x128xf32>
    %28 = tpu.matmul %27, %26, %cst_16 {dimension_numbers = #tpu.dot_dimension_numbers<[1], [0], [0], [1], [0, 0, 1, 1], [], []>} : vector<32x32xf32>, vector<32x128xf32>, vector<32x128xf32> -> vector<32x128xf32>
    %c0_17 = arith.constant 0 : index
    %c0_18 = arith.constant 0 : index
    %29 = vector.load %arg7[%c0_17, %c0_18] : memref<32x1xf32, #tpu.memory_space<vmem>>, vector<32x1xf32>
    %30 = vector.broadcast %29 : vector<32x1xf32> to vector<32x128xf32>
    %31 = arith.addf %28, %30 : vector<32x128xf32>
    %cst_19 = arith.constant 0.000000e+00 : f32
    %32 = vector.broadcast %cst_19 : f32 to vector<32x128xf32>
    %33 = arith.maximumf %31, %32 : vector<32x128xf32>
    %34 = math.absf %31 : vector<32x128xf32>
    %cst_20 = arith.constant 0.000000e+00 : f32
    %35 = vector.broadcast %cst_20 : f32 to vector<32x128xf32>
    %36 = arith.subf %35, %34 : vector<32x128xf32>
    %37 = math.exp %36 : vector<32x128xf32>
    %38 = math.log1p %37 : vector<32x128xf32>
    %39 = arith.addf %33, %38 : vector<32x128xf32>
    %c0_21 = arith.constant 0 : index
    %c0_22 = arith.constant 0 : index
    %40 = vector.load %arg8[%c0_21, %c0_22] : memref<8x32xf32, #tpu.memory_space<vmem>>, vector<8x32xf32>
    %cst_23 = arith.constant dense<0.000000e+00> : vector<8x128xf32>
    %41 = tpu.matmul %40, %39, %cst_23 {dimension_numbers = #tpu.dot_dimension_numbers<[1], [0], [0], [1], [0, 0, 1, 1], [], []>} : vector<8x32xf32>, vector<32x128xf32>, vector<8x128xf32> -> vector<8x128xf32>
    %c0_24 = arith.constant 0 : index
    %c0_25 = arith.constant 0 : index
    %42 = vector.load %arg9[%c0_24, %c0_25] : memref<8x1xf32, #tpu.memory_space<vmem>>, vector<8x1xf32>
    %43 = vector.broadcast %42 : vector<8x1xf32> to vector<8x128xf32>
    %44 = arith.addf %41, %43 : vector<8x128xf32>
    %c0_26 = arith.constant 0 : index
    %c0_27 = arith.constant 0 : index
    %45 = vector.load %arg10[%c0_26, %c0_27] : memref<8x128xf32, #tpu.memory_space<vmem>>, vector<8x128xf32>
    tpu.vector_store %arg10[%c0_26, %c0_27], %44 {strides = array<i32>} : memref<8x128xf32, #tpu.memory_space<vmem>>, vector<8x128xf32>,
    return
  }
  func.func @transform_0(%arg0: i32) -> (i32, i32) {
    %c0_i32 = arith.constant 0 : i32
    %c0_i32_0 = arith.constant 0 : i32
    return %c0_i32, %arg0 : i32, i32
  }
  func.func @transform_1(%arg0: i32) -> (i32, i32) {
    %c0_i32 = arith.constant 0 : i32
    %c0_i32_0 = arith.constant 0 : i32
    %c0_i32_1 = arith.constant 0 : i32
    return %c0_i32, %c0_i32_0 : i32, i32
  }
  func.func @transform_2(%arg0: i32) -> (i32, i32) {
    %c0_i32 = arith.constant 0 : i32
    %c0_i32_0 = arith.constant 0 : i32
    %c0_i32_1 = arith.constant 0 : i32
    return %c0_i32, %c0_i32_0 : i32, i32
  }
  func.func @transform_3(%arg0: i32) -> (i32, i32) {
    %c0_i32 = arith.constant 0 : i32
    %c0_i32_0 = arith.constant 0 : i32
    %c0_i32_1 = arith.constant 0 : i32
    return %c0_i32, %c0_i32_0 : i32, i32
  }
  func.func @transform_4(%arg0: i32) -> (i32, i32) {
    %c0_i32 = arith.constant 0 : i32
    %c0_i32_0 = arith.constant 0 : i32
    %c0_i32_1 = arith.constant 0 : i32
    return %c0_i32, %c0_i32_0 : i32, i32
  }
  func.func @transform_5(%arg0: i32) -> (i32, i32) {
    %c0_i32 = arith.constant 0 : i32
    %c0_i32_0 = arith.constant 0 : i32
    %c0_i32_1 = arith.constant 0 : i32
    return %c0_i32, %c0_i32_0 : i32, i32
  }
  func.func @transform_6(%arg0: i32) -> (i32, i32) {
    %c0_i32 = arith.constant 0 : i32
    %c0_i32_0 = arith.constant 0 : i32
    %c0_i32_1 = arith.constant 0 : i32
    return %c0_i32, %c0_i32_0 : i32, i32
  }
  func.func @transform_7(%arg0: i32) -> (i32, i32) {
    %c0_i32 = arith.constant 0 : i32
    %c0_i32_0 = arith.constant 0 : i32
    %c0_i32_1 = arith.constant 0 : i32
    return %c0_i32, %c0_i32_0 : i32, i32
  }
  func.func @transform_8(%arg0: i32) -> (i32, i32) {
    %c0_i32 = arith.constant 0 : i32
    %c0_i32_0 = arith.constant 0 : i32
    %c0_i32_1 = arith.constant 0 : i32
    return %c0_i32, %c0_i32_0 : i32, i32
  }
  func.func @transform_9(%arg0: i32) -> (i32, i32) {
    %c0_i32 = arith.constant 0 : i32
    %c0_i32_0 = arith.constant 0 : i32
    return %c0_i32, %arg0 : i32, i32
  }
}

</mosaic_0001>

<llo_original>
// kernel: ffnet_forward.1
$region0: #{ffnet_forward.1}
  #allocation0 [shape = 'u32[]', space=smem, size = 0x4, offset = 0x4, fixed_abs, tag = 'smem constant byte address 0x4 - core index']
  #allocation1 [shape = 'u32[72,128]{1,0:T(1,128)}', space=vmem, size = 0x9000, scoped, tag = 'internal scratch']
  %s0 = inlined_call_operand.vmem [shape: f32[16,128], index: 0, kind: input, shape index: {}]
  %s1 = inlined_call_operand.vmem [shape: f32[32,16], index: 1, kind: input, shape index: {}]
  %s2 = inlined_call_operand.vmem [shape: f32[32,1], index: 2, kind: input, shape index: {}]
  %s3 = inlined_call_operand.vmem [shape: f32[32,32], index: 3, kind: input, shape index: {}]
  %s4 = inlined_call_operand.vmem [shape: f32[32,1], index: 4, kind: input, shape index: {}]
  %s5 = inlined_call_operand.vmem [shape: f32[32,32], index: 5, kind: input, shape index: {}]
  %s6 = inlined_call_operand.vmem [shape: f32[32,1], index: 6, kind: input, shape index: {}]
  %s7 = inlined_call_operand.vmem [shape: f32[8,32], index: 7, kind: input, shape index: {}]
  %s8 = inlined_call_operand.vmem [shape: f32[8,1], index: 8, kind: input, shape index: {}]
  %s9 = inlined_call_operand.vmem [shape: f32[8,128], index: 9, kind: output, shape index: {}]
  %s10 = sld [smem:[#allocation0]]
  $region46: #{ffnet_forward.1} parent=0
    _
  %s12 = ssub.s32 1, %s10
  %s13 = scalar_select 0, %s12, %s10
  // Predicated region
  $region2: #{ffnet_forward.1} parent=0 // pred_check
    _
  $region3: #{ffnet_forward.1} parent=0 // pred_check_branch
    %15 = sbr.rel (0) target = $region5
  $region4: #{ffnet_forward.1} parent=0 // pred_region
    _
  $region5: #{ffnet_forward.1} parent=0 // pred_fallthru
    _
  // Predicated region
  $region6: #{ffnet_forward.1} parent=0 // pred_check
    _
  $region7: #{ffnet_forward.1} parent=0 // pred_check_branch
    %17 = sbr.rel (0) target = $region9
  $region8: #{ffnet_forward.1} parent=0 // pred_region
    _
  $region9: #{ffnet_forward.1} parent=0 // pred_fallthru
    _
  // Predicated region
  $region10: #{ffnet_forward.1} parent=0 // pred_check
    _
  $region11: #{ffnet_forward.1} parent=0 // pred_check_branch
    %19 = sbr.rel (0) target = $region13
  $region12: #{ffnet_forward.1} parent=0 // pred_region
    _
  $region13: #{ffnet_forward.1} parent=0 // pred_fallthru
    _
  // Predicated region
  $region14: #{ffnet_forward.1} parent=0 // pred_check
    _
  $region15: #{ffnet_forward.1} parent=0 // pred_check_branch
    %21 = sbr.rel (0) target = $region17
  $region16: #{ffnet_forward.1} parent=0 // pred_region
    _
  $region17: #{ffnet_forward.1} parent=0 // pred_fallthru
    _
  // Predicated region
  $region18: #{ffnet_forward.1} parent=0 // pred_check
    _
  $region19: #{ffnet_forward.1} parent=0 // pred_check_branch
    %23 = sbr.rel (0) target = $region21
  $region20: #{ffnet_forward.1} parent=0 // pred_region
    _
  $region21: #{ffnet_forward.1} parent=0 // pred_fallthru
    _
  // Predicated region
  $region22: #{ffnet_forward.1} parent=0 // pred_check
    _
  $region23: #{ffnet_forward.1} parent=0 // pred_check_branch
    %25 = sbr.rel (0) target = $region25
  $region24: #{ffnet_forward.1} parent=0 // pred_region
    _
  $region25: #{ffnet_forward.1} parent=0 // pred_fallthru
    _
  // Predicated region
  $region26: #{ffnet_forward.1} parent=0 // pred_check
    _
  $region27: #{ffnet_forward.1} parent=0 // pred_check_branch
    %27 = sbr.rel (0) target = $region29
  $region28: #{ffnet_forward.1} parent=0 // pred_region
    _
  $region29: #{ffnet_forward.1} parent=0 // pred_fallthru
    _
  // Predicated region
  $region30: #{ffnet_forward.1} parent=0 // pred_check
    _
  $region31: #{ffnet_forward.1} parent=0 // pred_check_branch
    %29 = sbr.rel (0) target = $region33
  $region32: #{ffnet_forward.1} parent=0 // pred_region
    _
  $region33: #{ffnet_forward.1} parent=0 // pred_fallthru
    _
  // Predicated region
  $region34: #{ffnet_forward.1} parent=0 // pred_check
    _
  $region35: #{ffnet_forward.1} parent=0 // pred_check_branch
    %31 = sbr.rel (0) target = $region37
  $region36: #{ffnet_forward.1} parent=0 // pred_region
    _
  $region37: #{ffnet_forward.1} parent=0 // pred_fallthru
    _
  %v32 = vld [vmem:[%s0] sm:$0xff]
  %v33 = vld [vmem:[%s0 + $0x8] sm:$0xff]
  %v34 = vld [vmem:[%s1] sm:$0xff]
  %v35 = vld [vmem:[%s1 + $0x8] sm:$0xff]
  %v36 = vld [vmem:[%s1 + $0x10] sm:$0xff]
  %v37 = vld [vmem:[%s1 + $0x18] sm:$0xff]
  %v38 = vld [vmem:[%s2] sm:$0xff]
  %v39 = vld [vmem:[%s2 + $0x8] sm:$0xff]
  %v40 = vld [vmem:[%s2 + $0x10] sm:$0xff]
  %v41 = vld [vmem:[%s2 + $0x18] sm:$0xff]
  %43 = vset.pattern.permute.xlu0 0
  %44 = vperm.xlu0 %43, %v38
  %v45 = vpop.permute.xlu0 %44
  %48 = vset.pattern.permute.xlu0 0
  %49 = vperm.xlu0 %48, %v39
  %v50 = vpop.permute.xlu0 %49
  %53 = vset.pattern.permute.xlu0 0
  %54 = vperm.xlu0 %53, %v40
  %v55 = vpop.permute.xlu0 %54
  %58 = vset.pattern.permute.xlu0 0
  %59 = vperm.xlu0 %58, %v41
  %v60 = vpop.permute.xlu0 %59
  %vm62 = vcmask 130048
  %v64 = vsel %vm62, %v34, 0
  %v67 = vsel %vm62, %v35, 0
  %v70 = vsel %vm62, %v36, 0
  %v73 = vsel %vm62, %v37, 0
  %75 = vmatpush.msra.mxu0 0.0
  %76 = vmatpush.msra.mxu0 0.0
  %77 = vmatpush.msra.mxu0 0.0
  %78 = vmatpush.msra.mxu0 0.0
  %79 = vmatpush.msra.mxu0 0.0
  %80 = vmatpush.msra.mxu0 0.0
  %81 = vmatpush.msra.mxu0 0.0
  %82 = vmatpush.msra.mxu0 0.0
  %83 = vmatpush.msra.mxu0 0.0
  %84 = vmatpush.msra.mxu0 0.0
  %85 = vmatpush.msra.mxu0 0.0
  %86 = vmatpush.msra.mxu0 0.0
  %87 = vmatpush.msra.mxu0 0.0
  %88 = vmatpush.msra.mxu0 0.0
  %89 = vmatpush.msra.mxu0 %v33
  %90 = vmatpush.msra.mxu0 %v32
  %91 = vmatmul.f32.gmra.mxu0 %v64
  %v92 = vpop.f32.mrf.mxu0
  %v93 = vadd.f32 %v45, %v92
  %94 = vmatmul.f32.gmra.mxu0 %v67
  %v95 = vpop.f32.mrf.mxu0
  %v96 = vadd.f32 %v50, %v95
  %97 = vmatmul.f32.gmra.mxu0 %v70
  %v98 = vpop.f32.mrf.mxu0
  %v99 = vadd.f32 %v55, %v98
  %100 = vmatmul.f32.gmra.mxu0 %v73
  %v101 = vpop.f32.mrf.mxu0
  %v102 = vadd.f32 %v60, %v101
  %103 = vdwg.mxu0
  %v104 = vmax.f32 %v93, 0.0
  %v105 = vmax.f32 %v96, 0.0
  %v106 = vmax.f32 %v99, 0.0
  %v107 = vmax.f32 %v102, 0.0
  %v108 = vand.u32 2147483647, %v93
  %v109 = vand.u32 2147483647, %v96
  %v110 = vand.u32 2147483647, %v99
  %v111 = vand.u32 2147483647, %v102
  %v112 = vsub.f32 0.0, %v108
  %v113 = vsub.f32 0.0, %v109
  %v114 = vsub.f32 0.0, %v110
  %v115 = vsub.f32 0.0, %v111
  %v116 = vmul.f32 %v112, 1.442695
  %v117 = vpow.pop %v116
  %v118 = vmul.f32 %v113, 1.442695
  %v119 = vpow.pop %v118
  %v120 = vmul.f32 %v114, 1.442695
  %v121 = vpow.pop %v120
  %v122 = vmul.f32 %v115, 1.442695
  %v123 = vpow.pop %v122
  %v124 = vadd.f32 %v117, 1.0
  %v125 = vlog2.pop %v124
  %v126 = vmul.f32 %v125, 0.6931472
  %v127 = vmul.f32 -0.5, %v117
  %v128 = vadd.f32 %v127, 1.0
  %v129 = vmul.f32 %v128, %v117
  %v130 = vand.u32 2147483647, %v117
  %vm131 = vcmp.lt.f32.partialorder %v130, 0.0004427343
  %v132 = vsel %vm131, %v129, %v126
  %v133 = vadd.f32 %v119, 1.0
  %v134 = vlog2.pop %v133
  %v135 = vmul.f32 %v134, 0.6931472
  %v136 = vmul.f32 -0.5, %v119
  %v137 = vadd.f32 %v136, 1.0
  %v138 = vmul.f32 %v137, %v119
  %v139 = vand.u32 2147483647, %v119
  %vm140 = vcmp.lt.f32.partialorder %v139, 0.0004427343
  %v141 = vsel %vm140, %v138, %v135
  %v142 = vadd.f32 %v121, 1.0
  %v143 = vlog2.pop %v142
  %v144 = vmul.f32 %v143, 0.6931472
  %v145 = vmul.f32 -0.5, %v121
  %v146 = vadd.f32 %v145, 1.0
  %v147 = vmul.f32 %v146, %v121
  %v148 = vand.u32 2147483647, %v121
  %vm149 = vcmp.lt.f32.partialorder %v148, 0.0004427343
  %v150 = vsel %vm149, %v147, %v144
  %v151 = vadd.f32 %v123, 1.0
  %v152 = vlog2.pop %v151
  %v153 = vmul.f32 %v152, 0.6931472
  %v154 = vmul.f32 -0.5, %v123
  %v155 = vadd.f32 %v154, 1.0
  %v156 = vmul.f32 %v155, %v123
  %v157 = vand.u32 2147483647, %v123
  %vm158 = vcmp.lt.f32.partialorder %v157, 0.0004427343
  %v159 = vsel %vm158, %v156, %v153
  %v160 = vadd.f32 %v104, %v132
  %v161 = vadd.f32 %v105, %v141
  %v162 = vadd.f32 %v106, %v150
  %v163 = vadd.f32 %v107, %v159
  %v164 = vld [vmem:[%s3] sm:$0xff]
  %v165 = vld [vmem:[%s3 + $0x8] sm:$0xff]
  %v166 = vld [vmem:[%s3 + $0x10] sm:$0xff]
  %v167 = vld [vmem:[%s3 + $0x18] sm:$0xff]
  %v168 = vld [vmem:[%s4] sm:$0xff]
  %v169 = vld [vmem:[%s4 + $0x8] sm:$0xff]
  %v170 = vld [vmem:[%s4 + $0x10] sm:$0xff]
  %v171 = vld [vmem:[%s4 + $0x18] sm:$0xff]
  %173 = vset.pattern.permute.xlu0 0
  %174 = vperm.xlu0 %173, %v168
  %v175 = vpop.permute.xlu0 %174
  %178 = vset.pattern.permute.xlu0 0
  %179 = vperm.xlu0 %178, %v169
  %v180 = vpop.permute.xlu0 %179
  %183 = vset.pattern.permute.xlu0 0
  %184 = vperm.xlu0 %183, %v170
  %v185 = vpop.permute.xlu0 %184
  %188 = vset.pattern.permute.xlu0 0
  %189 = vperm.xlu0 %188, %v171
  %v190 = vpop.permute.xlu0 %189
  %vm192 = vcmask 261120
  %v194 = vsel %vm192, %v164, 0
  %v197 = vsel %vm192, %v165, 0
  %v200 = vsel %vm192, %v166, 0
  %v203 = vsel %vm192, %v167, 0
  %205 = vmatpush.msra.mxu0 0.0
  %206 = vmatpush.msra.mxu0 0.0
  %207 = vmatpush.msra.mxu0 0.0
  %208 = vmatpush.msra.mxu0 0.0
  %209 = vmatpush.msra.mxu0 0.0
  %210 = vmatpush.msra.mxu0 0.0
  %211 = vmatpush.msra.mxu0 0.0
  %212 = vmatpush.msra.mxu0 0.0
  %213 = vmatpush.msra.mxu0 0.0
  %214 = vmatpush.msra.mxu0 0.0
  %215 = vmatpush.msra.mxu0 0.0
  %216 = vmatpush.msra.mxu0 0.0
  %217 = vmatpush.msra.mxu0 %v163
  %218 = vmatpush.msra.mxu0 %v162
  %219 = vmatpush.msra.mxu0 %v161
  %220 = vmatpush.msra.mxu0 %v160
  %221 = vmatmul.f32.gmra.mxu0 %v194
  %v222 = vpop.f32.mrf.mxu0
  %v223 = vadd.f32 %v175, %v222
  %224 = vmatmul.f32.gmra.mxu0 %v197
  %v225 = vpop.f32.mrf.mxu0
  %v226 = vadd.f32 %v180, %v225
  %227 = vmatmul.f32.gmra.mxu0 %v200
  %v228 = vpop.f32.mrf.mxu0
  %v229 = vadd.f32 %v185, %v228
  %230 = vmatmul.f32.gmra.mxu0 %v203
  %v231 = vpop.f32.mrf.mxu0
  %v232 = vadd.f32 %v190, %v231
  %233 = vdwg.mxu0
  %v234 = vmax.f32 %v223, 0.0
  %v235 = vmax.f32 %v226, 0.0
  %v236 = vmax.f32 %v229, 0.0
  %v237 = vmax.f32 %v232, 0.0
  %v238 = vand.u32 2147483647, %v223
  %v239 = vand.u32 2147483647, %v226
  %v240 = vand.u32 2147483647, %v229
  %v241 = vand.u32 2147483647, %v232
  %v242 = vsub.f32 0.0, %v238
  %v243 = vsub.f32 0.0, %v239
  %v244 = vsub.f32 0.0, %v240
  %v245 = vsub.f32 0.0, %v241
  %v246 = vmul.f32 %v242, 1.442695
  %v247 = vpow.pop %v246
  %v248 = vmul.f32 %v243, 1.442695
  %v249 = vpow.pop %v248
  %v250 = vmul.f32 %v244, 1.442695
  %v251 = vpow.pop %v250
  %v252 = vmul.f32 %v245, 1.442695
  %v253 = vpow.pop %v252
  %v254 = vadd.f32 %v247, 1.0
  %v255 = vlog2.pop %v254
  %v256 = vmul.f32 %v255, 0.6931472
  %v257 = vmul.f32 -0.5, %v247
  %v258 = vadd.f32 %v257, 1.0
  %v259 = vmul.f32 %v258, %v247
  %v260 = vand.u32 2147483647, %v247
  %vm261 = vcmp.lt.f32.partialorder %v260, 0.0004427343
  %v262 = vsel %vm261, %v259, %v256
  %v263 = vadd.f32 %v249, 1.0
  %v264 = vlog2.pop %v263
  %v265 = vmul.f32 %v264, 0.6931472
  %v266 = vmul.f32 -0.5, %v249
  %v267 = vadd.f32 %v266, 1.0
  %v268 = vmul.f32 %v267, %v249
  %v269 = vand.u32 2147483647, %v249
  %vm270 = vcmp.lt.f32.partialorder %v269, 0.0004427343
  %v271 = vsel %vm270, %v268, %v265
  %v272 = vadd.f32 %v251, 1.0
  %v273 = vlog2.pop %v272
  %v274 = vmul.f32 %v273, 0.6931472
  %v275 = vmul.f32 -0.5, %v251
  %v276 = vadd.f32 %v275, 1.0
  %v277 = vmul.f32 %v276, %v251
  %v278 = vand.u32 2147483647, %v251
  %vm279 = vcmp.lt.f32.partialorder %v278, 0.0004427343
  %v280 = vsel %vm279, %v277, %v274
  %v281 = vadd.f32 %v253, 1.0
  %v282 = vlog2.pop %v281
  %v283 = vmul.f32 %v282, 0.6931472
  %v284 = vmul.f32 -0.5, %v253
  %v285 = vadd.f32 %v284, 1.0
  %v286 = vmul.f32 %v285, %v253
  %v287 = vand.u32 2147483647, %v253
  %vm288 = vcmp.lt.f32.partialorder %v287, 0.0004427343
  %v289 = vsel %vm288, %v286, %v283
  %v290 = vadd.f32 %v234, %v262
  %v291 = vadd.f32 %v235, %v271
  %v292 = vadd.f32 %v236, %v280
  %v293 = vadd.f32 %v237, %v289
  %v294 = vld [vmem:[%s5] sm:$0xff]
  %v295 = vld [vmem:[%s5 + $0x8] sm:$0xff]
  %v296 = vld [vmem:[%s5 + $0x10] sm:$0xff]
  %v297 = vld [vmem:[%s5 + $0x18] sm:$0xff]
  %v298 = vld [vmem:[%s6] sm:$0xff]
  %v299 = vld [vmem:[%s6 + $0x8] sm:$0xff]
  %v300 = vld [vmem:[%s6 + $0x10] sm:$0xff]
  %v301 = vld [vmem:[%s6 + $0x18] sm:$0xff]
  %303 = vset.pattern.permute.xlu0 0
  %304 = vperm.xlu0 %303, %v298
  %v305 = vpop.permute.xlu0 %304
  %308 = vset.pattern.permute.xlu0 0
  %309 = vperm.xlu0 %308, %v299
  %v310 = vpop.permute.xlu0 %309
  %313 = vset.pattern.permute.xlu0 0
  %314 = vperm.xlu0 %313, %v300
  %v315 = vpop.permute.xlu0 %314
  %318 = vset.pattern.permute.xlu0 0
  %319 = vperm.xlu0 %318, %v301
  %v320 = vpop.permute.xlu0 %319
  %v323 = vsel %vm192, %v294, 0
  %v326 = vsel %vm192, %v295, 0
  %v329 = vsel %vm192, %v296, 0
  %v332 = vsel %vm192, %v297, 0
  %334 = vmatpush.msra.mxu0 0.0
  %335 = vmatpush.msra.mxu0 0.0
  %336 = vmatpush.msra.mxu0 0.0
  %337 = vmatpush.msra.mxu0 0.0
  %338 = vmatpush.msra.mxu0 0.0
  %339 = vmatpush.msra.mxu0 0.0
  %340 = vmatpush.msra.mxu0 0.0
  %341 = vmatpush.msra.mxu0 0.0
  %342 = vmatpush.msra.mxu0 0.0
  %343 = vmatpush.msra.mxu0 0.0
  %344 = vmatpush.msra.mxu0 0.0
  %345 = vmatpush.msra.mxu0 0.0
  %346 = vmatpush.msra.mxu0 %v293
  %347 = vmatpush.msra.mxu0 %v292
  %348 = vmatpush.msra.mxu0 %v291
  %349 = vmatpush.msra.mxu0 %v290
  %350 = vmatmul.f32.gmra.mxu0 %v323
  %v351 = vpop.f32.mrf.mxu0
  %v352 = vadd.f32 %v305, %v351
  %353 = vmatmul.f32.gmra.mxu0 %v326
  %v354 = vpop.f32.mrf.mxu0
  %v355 = vadd.f32 %v310, %v354
  %356 = vmatmul.f32.gmra.mxu0 %v329
  %v357 = vpop.f32.mrf.mxu0
  %v358 = vadd.f32 %v315, %v357
  %359 = vmatmul.f32.gmra.mxu0 %v332
  %v360 = vpop.f32.mrf.mxu0
  %v361 = vadd.f32 %v320, %v360
  %362 = vdwg.mxu0
  %v363 = vmax.f32 %v352, 0.0
  %v364 = vmax.f32 %v355, 0.0
  %v365 = vmax.f32 %v358, 0.0
  %v366 = vmax.f32 %v361, 0.0
  %v367 = vand.u32 2147483647, %v352
  %v368 = vand.u32 2147483647, %v355
  %v369 = vand.u32 2147483647, %v358
  %v370 = vand.u32 2147483647, %v361
  %v371 = vsub.f32 0.0, %v367
  %v372 = vsub.f32 0.0, %v368
  %v373 = vsub.f32 0.0, %v369
  %v374 = vsub.f32 0.0, %v370
  %v375 = vmul.f32 %v371, 1.442695
  %v376 = vpow.pop %v375
  %v377 = vmul.f32 %v372, 1.442695
  %v378 = vpow.pop %v377
  %v379 = vmul.f32 %v373, 1.442695
  %v380 = vpow.pop %v379
  %v381 = vmul.f32 %v374, 1.442695
  %v382 = vpow.pop %v381
  %v383 = vadd.f32 %v376, 1.0
  %v384 = vlog2.pop %v383
  %v385 = vmul.f32 %v384, 0.6931472
  %v386 = vmul.f32 -0.5, %v376
  %v387 = vadd.f32 %v386, 1.0
  %v388 = vmul.f32 %v387, %v376
  %v389 = vand.u32 2147483647, %v376
  %vm390 = vcmp.lt.f32.partialorder %v389, 0.0004427343
  %v391 = vsel %vm390, %v388, %v385
  %v392 = vadd.f32 %v378, 1.0
  %v393 = vlog2.pop %v392
  %v394 = vmul.f32 %v393, 0.6931472
  %v395 = vmul.f32 -0.5, %v378
  %v396 = vadd.f32 %v395, 1.0
  %v397 = vmul.f32 %v396, %v378
  %v398 = vand.u32 2147483647, %v378
  %vm399 = vcmp.lt.f32.partialorder %v398, 0.0004427343
  %v400 = vsel %vm399, %v397, %v394
  %v401 = vadd.f32 %v380, 1.0
  %v402 = vlog2.pop %v401
  %v403 = vmul.f32 %v402, 0.6931472
  %v404 = vmul.f32 -0.5, %v380
  %v405 = vadd.f32 %v404, 1.0
  %v406 = vmul.f32 %v405, %v380
  %v407 = vand.u32 2147483647, %v380
  %vm408 = vcmp.lt.f32.partialorder %v407, 0.0004427343
  %v409 = vsel %vm408, %v406, %v403
  %v410 = vadd.f32 %v382, 1.0
  %v411 = vlog2.pop %v410
  %v412 = vmul.f32 %v411, 0.6931472
  %v413 = vmul.f32 -0.5, %v382
  %v414 = vadd.f32 %v413, 1.0
  %v415 = vmul.f32 %v414, %v382
  %v416 = vand.u32 2147483647, %v382
  %vm417 = vcmp.lt.f32.partialorder %v416, 0.0004427343
  %v418 = vsel %vm417, %v415, %v412
  %v419 = vadd.f32 %v363, %v391
  %v420 = vadd.f32 %v364, %v400
  %v421 = vadd.f32 %v365, %v409
  %v422 = vadd.f32 %v366, %v418
  %v423 = vld [vmem:[%s7] sm:$0xff]
  %v424 = vld [vmem:[%s8] sm:$0xff]
  %426 = vset.pattern.permute.xlu0 0
  %427 = vperm.xlu0 %426, %v424
  %v428 = vpop.permute.xlu0 %427
  %v431 = vsel %vm192, %v423, 0
  %433 = vmatpush.msra.mxu0 0.0
  %434 = vmatpush.msra.mxu0 0.0
  %435 = vmatpush.msra.mxu0 0.0
  %436 = vmatpush.msra.mxu0 0.0
  %437 = vmatpush.msra.mxu0 0.0
  %438 = vmatpush.msra.mxu0 0.0
  %439 = vmatpush.msra.mxu0 0.0
  %440 = vmatpush.msra.mxu0 0.0
  %441 = vmatpush.msra.mxu0 0.0
  %442 = vmatpush.msra.mxu0 0.0
  %443 = vmatpush.msra.mxu0 0.0
  %444 = vmatpush.msra.mxu0 0.0
  %445 = vmatpush.msra.mxu0 %v422
  %446 = vmatpush.msra.mxu0 %v421
  %447 = vmatpush.msra.mxu0 %v420
  %448 = vmatpush.msra.mxu0 %v419
  %449 = vmatmul.f32.gmra.mxu0 %v431
  %v450 = vpop.f32.mrf.mxu0
  %v451 = vadd.f32 %v428, %v450
  %452 = vdwg.mxu0
  %453 = vst [vmem:[%s9] sm:$0xff] %v451
  // Predicated region
  $region38: #{ffnet_forward.1} parent=0 // pred_check
    _
  $region39: #{ffnet_forward.1} parent=0 // pred_check_branch
    %455 = sbr.rel (0) target = $region41
  $region40: #{ffnet_forward.1} parent=0 // pred_region
    _
  $region41: #{ffnet_forward.1} parent=0 // pred_fallthru
    _
  // Predicated region
  $region42: #{ffnet_forward.1} parent=0 // pred_check
    _
  $region43: #{ffnet_forward.1} parent=0 // pred_check_branch
    %457 = sbr.rel (0) target = $region45
  $region44: #{ffnet_forward.1} parent=0 // pred_region
    _
  $region45: #{ffnet_forward.1} parent=0 // pred_fallthru
    _

</llo_original>
